<compile_context>
chip_gen: v7x
topology: tpu7x:2x2x1
jax: 0.10.0
libtpu: 0.0.40
codegen_flags: <defaults>
</compile_context>

<pallas_src>
import functools

import jax
import jax.numpy as jnp
from jax import lax
from jax.experimental import pallas as pl
from jax.experimental.pallas import tpu as pltpu

BN_EPS = 1e-5
LANE = 128


def _round_up(x, m):
    return (x + m - 1) // m * m


def _conv_relu_stats_kernel(patches_ref, w_ref, b_ref,
                            y_ref, psum_ref, psumsq_ref, acc_ref,
                            *, tile_m, m_real, need_row_mask):
    """One (M-tile, K-tile) grid step: matmul-accumulate; on the last K step
    add bias, ReLU, store bf16 y and per-tile BN partial sums.

    patches_ref: [tile_m, tile_k]  bf16   im2col patch stripe
    w_ref:       [tile_k, C_pad]   bf16   weight stripe
    b_ref:       [1, C_pad]        f32    conv bias
    y_ref:       [tile_m, C_pad]   bf16   conv+bias+ReLU output (last K step)
    psum_ref / psumsq_ref: [1, 8, C_pad] f32  per-M-tile partial sums
    acc_ref:     [tile_m, C_pad]   f32    VMEM accumulator across the K axis
    """
    i = pl.program_id(0)
    k = pl.program_id(1)

    @pl.when(k == 0)
    def _():
        acc_ref[...] = jnp.zeros_like(acc_ref)

    acc_ref[...] += jnp.dot(patches_ref[...], w_ref[...],
                            preferred_element_type=jnp.float32)

    @pl.when(k == pl.num_programs(1) - 1)
    def _():
        y = jnp.maximum(acc_ref[...] + b_ref[...], 0.0)
        y_ref[...] = y.astype(y_ref.dtype)

        c_pad = y.shape[1]

        def write_stats(ym):
            # (tile_m, C) -> (tile_m/8, 8, C): leading-dim split only, so the
            # axis-0 reduce is pure VPU vreg adds (no XLU cross-sublane work).
            yr = ym.reshape(tile_m // 8, 8, c_pad)
            psum_ref[...] = jnp.sum(yr, axis=0, keepdims=True)
            psumsq_ref[...] = jnp.sum(yr * yr, axis=0, keepdims=True)

        if need_row_mask:
            last_m = pl.num_programs(0) - 1

            @pl.when(i == last_m)
            def _():
                row = i * tile_m + lax.broadcasted_iota(
                    jnp.int32, (tile_m, 1), 0)
                write_stats(jnp.where(row < m_real, y, 0.0))

            @pl.when(i != last_m)
            def _():
                write_stats(y)
        else:
            write_stats(y)


def conv_block_forward(x_nchw, weight, bias, gamma, beta, *,
                       stride=1, padding=1, tile_m=512, tile_k=512):
    """x_nchw: [N, Cin, H, W]; weight: [Cout, Cin, KH, KW] (PyTorch layout)."""
    n, cin, h, w = x_nchw.shape
    cout, _, kh, kw = weight.shape

    # ------------- host glue: NCHW -> NHWC (bf16), pad, im2col ----------------
    # Cast to bf16 BEFORE slicing/stacking so the materialized patch matrix is
    # half the size (and half the HBM traffic) of the previous f32 version.
    x = jnp.transpose(x_nchw, (0, 2, 3, 1)).astype(jnp.bfloat16)
    xp = jnp.pad(x, ((0, 0), (padding, padding), (padding, padding), (0, 0)))
    oh = (h + 2 * padding - kh) // stride + 1
    ow = (w + 2 * padding - kw) // stride + 1
    slices = [
        xp[:, i: i + (oh - 1) * stride + 1: stride,
              j: j + (ow - 1) * stride + 1: stride, :]
        for i in range(kh) for j in range(kw)
    ]
    patches = jnp.stack(slices, axis=3)              # [N, OH, OW, KH*KW, Cin]
    m = n * oh * ow
    k = kh * kw * cin
    patches = patches.reshape(m, k)

    # ------------- pad to MXU / lane / sublane friendly shapes -----------------
    c_align = 256 if cout >= 192 else LANE           # 256-wide MXU on v6e/v7x
    c_pad = _round_up(cout, c_align)

    tile_k = max(LANE, _round_up(min(tile_k, _round_up(k, LANE)), LANE))
    k_pad = _round_up(k, tile_k)
    num_k = k_pad // tile_k

    tile_m = max(8, _round_up(min(tile_m, _round_up(m, 8)), 8))
    m_pad = _round_up(m, tile_m)
    num_m = m_pad // tile_m

    patches = jnp.pad(patches, ((0, m_pad - m), (0, k_pad - k)))
    w_mat = jnp.transpose(weight, (2, 3, 1, 0)).reshape(k, cout)
    w_mat = jnp.pad(w_mat, ((0, k_pad - k), (0, c_pad - cout))).astype(jnp.bfloat16)
    b_row = jnp.pad(bias.astype(jnp.float32), (0, c_pad - cout)).reshape(1, c_pad)

    # VMEM budget from actual tiles: double-buffered in/out + resident f32 acc.
    per_step = (tile_m * tile_k * 2 + tile_k * c_pad * 2 + c_pad * 4
                + tile_m * c_pad * 2 + 2 * 8 * c_pad * 4)
    vmem_need = 2 * per_step + tile_m * c_pad * 4
    vmem_limit = int(min(max(vmem_need * 5 // 4, 32 * 1024 * 1024),
                         64 * 1024 * 1024))

    kern = functools.partial(
        _conv_relu_stats_kernel,
        tile_m=tile_m, m_real=m, need_row_mask=(m_pad != m))

    y, psum, psumsq = pl.pallas_call(
        kern,
        out_shape=(
            jax.ShapeDtypeStruct((m_pad, c_pad), jnp.bfloat16),
            jax.ShapeDtypeStruct((num_m, 8, c_pad), jnp.float32),
            jax.ShapeDtypeStruct((num_m, 8, c_pad), jnp.float32),
        ),
        grid_spec=pltpu.PrefetchScalarGridSpec(
            num_scalar_prefetch=0,
            grid=(num_m, num_k),
            in_specs=[
                pl.BlockSpec((tile_m, tile_k), lambda i, kk: (i, kk)),
                pl.BlockSpec((tile_k, c_pad), lambda i, kk: (kk, 0)),
                pl.BlockSpec((1, c_pad), lambda i, kk: (0, 0)),
            ],
            out_specs=(
                pl.BlockSpec((tile_m, c_pad), lambda i, kk: (i, 0)),
                pl.BlockSpec((1, 8, c_pad), lambda i, kk: (i, 0, 0)),
                pl.BlockSpec((1, 8, c_pad), lambda i, kk: (i, 0, 0)),
            ),
            scratch_shapes=[pltpu.VMEM((tile_m, c_pad), jnp.float32)],
        ),
        compiler_params=pltpu.CompilerParams(
            # M tiles are fully independent (stats are per-tile partials), so
            # the M axis is parallel (megacore / both v7x TCs); K is the matmul
            # reduction axis.
            dimension_semantics=("parallel", "arbitrary"),
            vmem_limit_bytes=vmem_limit,
        ),
    )(patches, w_mat, b_row)

    # --------- BN scale/shift from partial sums, fused into the epilogue -------
    ch_sum = jnp.sum(psum, axis=(0, 1))[:cout]
    ch_sumsq = jnp.sum(psumsq, axis=(0, 1))[:cout]
    inv_count = 1.0 / float(m)
    mean = ch_sum * inv_count
    var = jnp.maximum(ch_sumsq * inv_count - mean * mean, 0.0)  # guard cancellation
    scale = gamma.astype(jnp.float32) * lax.rsqrt(var + BN_EPS)
    shift = beta.astype(jnp.float32) - mean * scale

    # XLA fuses this FMA into the slice + reshape + NCHW transpose copy, so BN
    # application costs no extra HBM pass over y.
    out = y[:m, :cout].astype(jnp.float32) * scale + shift
    out = out.reshape(n, oh, ow, cout)
    return jnp.transpose(out, (0, 3, 1, 2))


def _reference(x, weight, bias, gamma, beta, *, padding):
    """Pure-JAX reference: Conv2d -> ReLU -> BatchNorm2d (training mode)."""
    y = lax.conv_general_dilated(
        x, weight, window_strides=(1, 1),
        padding=[(padding, padding), (padding, padding)],
        dimension_numbers=("NCHW", "OIHW", "NCHW"))
    y = y + bias[None, :, None, None]
    y = jnp.maximum(y, 0.0)
    mean = jnp.mean(y, axis=(0, 2, 3), keepdims=True)
    var = jnp.mean((y - mean) ** 2, axis=(0, 2, 3), keepdims=True)
    return (gamma[None, :, None, None] * (y - mean) * lax.rsqrt(var + BN_EPS)
            + beta[None, :, None, None])


if __name__ == "__main__":
    key = jax.random.PRNGKey(0)
    keys = jax.random.split(key, 12)

    def run_case(keys3, n, cin, cout, hw, tile_m, tile_k, affine_rand=False):
        k_x, k_w, k_b = keys3[0], keys3[1], keys3[2]
        x = jax.random.normal(k_x, (n, cin, hw, hw), dtype=jnp.float32)
        weight = jax.random.normal(k_w, (cout, cin, 3, 3), dtype=jnp.float32) * 0.1
        bias = jax.random.normal(k_b, (cout,), dtype=jnp.float32) * 0.1
        if affine_rand:
            kg, kb2 = jax.random.split(k_b)
            gamma = 1.0 + 0.1 * jax.random.normal(kg, (cout,), dtype=jnp.float32)
            beta = 0.1 * jax.random.normal(kb2, (cout,), dtype=jnp.float32)
        else:
            gamma = jnp.ones((cout,), dtype=jnp.float32)   # BatchNorm2d init
            beta = jnp.zeros((cout,), dtype=jnp.float32)
        out = conv_block_forward(x, weight, bias, gamma, beta,
                                 padding=1, tile_m=tile_m, tile_k=tile_k)
        jax.block_until_ready(out)
        ref = _reference(x, weight, bias, gamma, beta, padding=1)
        assert out.shape == ref.shape
        err = float(jnp.max(jnp.abs(out - ref)))
        # Loose tolerance: matmul inputs and stored y are bf16 (f32 accumulation).
        assert err < 0.15, f"max abs error {err}"

    # Primary small shape: batch=2, in_channels=4, out_channels=8, 16x16, k=3, pad=1.
    run_case(keys[0:3], n=2, cin=4, cout=8, hw=16, tile_m=256, tile_k=512)
    # Odd spatial size -> padded M rows (exercises the last-tile stats mask).
    run_case(keys[3:6], n=2, cin=4, cout=8, hw=15, tile_m=256, tile_k=512)
    # Larger Cin with a small K tile -> multi-step K reduction (VMEM accumulator).
    run_case(keys[6:9], n=1, cin=48, cout=16, hw=8, tile_m=256, tile_k=128,
             affine_rand=True)

    print("KERNEL_OK")
</pallas_src>

<mosaic_0001>
module attributes {stable_mosaic.version = 11 : i64} {
  func.func @_conv_relu_stats_kernel(%arg0: i32, %arg1: i32, %arg2: memref<256x128xbf16, #tpu.memory_space<vmem>>, %arg3: memref<128x128xbf16, #tpu.memory_space<vmem>>, %arg4: memref<1x128xf32, #tpu.memory_space<vmem>>, %arg5: memref<256x128xbf16, #tpu.memory_space<vmem>>, %arg6: memref<1x8x128xf32, #tpu.memory_space<vmem>>, %arg7: memref<1x8x128xf32, #tpu.memory_space<vmem>>, %arg8: memref<256x128xf32, #tpu.memory_space<vmem>>) attributes {dimension_semantics = [#tpu.dimension_semantics<parallel>, #tpu.dimension_semantics<arbitrary>], iteration_bounds = array<i64: 2, 1>, scalar_prefetch = 0 : i64, scratch_operands = 1 : i64, tpu.core_type = #tpu.core_type<tc>, window_params = [{transform_indices = @transform_0, window_bounds = array<i64: 256, 128>}, {transform_indices = @transform_1, window_bounds = array<i64: 128, 128>}, {pipeline_mode = #tpu.pipeline_mode<synchronous>, transform_indices = @transform_2, window_bounds = array<i64: 1, 128>}, {transform_indices = @transform_3, window_bounds = array<i64: 256, 128>}, {transform_indices = @transform_4, window_bounds = array<i64: 1, 8, 128>}, {transform_indices = @transform_5, window_bounds = array<i64: 1, 8, 128>}]} {
    %c0_i32 = arith.constant 0 : i32
    %0 = arith.cmpi eq, %arg1, %c0_i32 : i32
    %1 = arith.extui %0 : i1 to i32
    %c0_i32_0 = arith.constant 0 : i32
    %2 = arith.cmpi ne, %1, %c0_i32_0 : i32
    scf.if %2 {
      %cst_10 = arith.constant 0.000000e+00 : f32
      %12 = vector.broadcast %cst_10 : f32 to vector<256x128xf32>
      %c0_11 = arith.constant 0 : index
      %c0_12 = arith.constant 0 : index
      %13 = vector.load %arg8[%c0_11, %c0_12] : memref<256x128xf32, #tpu.memory_space<vmem>>, vector<256x128xf32>
      tpu.vector_store %arg8[%c0_11, %c0_12], %12 {strides = array<i32>} : memref<256x128xf32, #tpu.memory_space<vmem>>, vector<256x128xf32>,
    } else {
    }
    %c0 = arith.constant 0 : index
    %c0_1 = arith.constant 0 : index
    %3 = vector.load %arg8[%c0, %c0_1] : memref<256x128xf32, #tpu.memory_space<vmem>>, vector<256x128xf32>
    %c0_2 = arith.constant 0 : index
    %c0_3 = arith.constant 0 : index
    %4 = vector.load %arg2[%c0_2, %c0_3] : memref<256x128xbf16, #tpu.memory_space<vmem>>, vector<256x128xbf16>
    %c0_4 = arith.constant 0 : index
    %c0_5 = arith.constant 0 : index
    %5 = vector.load %arg3[%c0_4, %c0_5] : memref<128x128xbf16, #tpu.memory_space<vmem>>, vector<128x128xbf16>
    %cst = arith.constant dense<0.000000e+00> : vector<256x128xf32>
    %6 = tpu.matmul %4, %5, %cst {dimension_numbers = #tpu.dot_dimension_numbers<[1], [0], [0], [1], [0, 0, 1, 1], [], []>} : vector<256x128xbf16>, vector<128x128xbf16>, vector<256x128xf32> -> vector<256x128xf32>
    %7 = arith.addf %3, %6 : vector<256x128xf32>
    %c0_6 = arith.constant 0 : index
    %c0_7 = arith.constant 0 : index
    %8 = vector.load %arg8[%c0_6, %c0_7] : memref<256x128xf32, #tpu.memory_space<vmem>>, vector<256x128xf32>
    tpu.vector_store %arg8[%c0_6, %c0_7], %7 {strides = array<i32>} : memref<256x128xf32, #tpu.memory_space<vmem>>, vector<256x128xf32>,
    %c0_i32_8 = arith.constant 0 : i32
    %9 = arith.cmpi eq, %arg1, %c0_i32_8 : i32
    %10 = arith.extui %9 : i1 to i32
    %c0_i32_9 = arith.constant 0 : i32
    %11 = arith.cmpi ne, %10, %c0_i32_9 : i32
    scf.if %11 {
      %c0_10 = arith.constant 0 : index
      %c0_11 = arith.constant 0 : index
      %12 = vector.load %arg8[%c0_10, %c0_11] : memref<256x128xf32, #tpu.memory_space<vmem>>, vector<256x128xf32>
      %c0_12 = arith.constant 0 : index
      %c0_13 = arith.constant 0 : index
      %13 = vector.load %arg4[%c0_12, %c0_13] : memref<1x128xf32, #tpu.memory_space<vmem>>, vector<1x128xf32>
      %14 = vector.broadcast %13 : vector<1x128xf32> to vector<256x128xf32>
      %15 = arith.addf %12, %14 : vector<256x128xf32>
      %cst_14 = arith.constant 0.000000e+00 : f32
      %16 = vector.broadcast %cst_14 : f32 to vector<256x128xf32>
      %17 = arith.maximumf %15, %16 : vector<256x128xf32>
      %18 = arith.truncf %17 : vector<256x128xf32> to vector<256x128xbf16>
      %c0_15 = arith.constant 0 : index
      %c0_16 = arith.constant 0 : index
      %19 = vector.load %arg5[%c0_15, %c0_16] : memref<256x128xbf16, #tpu.memory_space<vmem>>, vector<256x128xbf16>
      tpu.vector_store %arg5[%c0_15, %c0_16], %18 {strides = array<i32>} : memref<256x128xbf16, #tpu.memory_space<vmem>>, vector<256x128xbf16>,
      %20 = vector.shape_cast %17 : vector<256x128xf32> to vector<32x8x128xf32>
      %cst_17 = arith.constant dense<0.000000e+00> : vector<8x128xf32>
      %21 = vector.multi_reduction <add>, %20, %cst_17 [0] : vector<32x8x128xf32> to vector<8x128xf32>
      %22 = vector.shape_cast %21 : vector<8x128xf32> to vector<1x8x128xf32>
      %c0_18 = arith.constant 0 : index
      %c0_19 = arith.constant 0 : index
      %c0_20 = arith.constant 0 : index
      %23 = vector.load %arg6[%c0_18, %c0_19, %c0_20] : memref<1x8x128xf32, #tpu.memory_space<vmem>>, vector<1x8x128xf32>
      tpu.vector_store %arg6[%c0_18, %c0_19, %c0_20], %22 {strides = array<i32>} : memref<1x8x128xf32, #tpu.memory_space<vmem>>, vector<1x8x128xf32>,
      %24 = arith.mulf %20, %20 : vector<32x8x128xf32>
      %cst_21 = arith.constant dense<0.000000e+00> : vector<8x128xf32>
      %25 = vector.multi_reduction <add>, %24, %cst_21 [0] : vector<32x8x128xf32> to vector<8x128xf32>
      %26 = vector.shape_cast %25 : vector<8x128xf32> to vector<1x8x128xf32>
      %c0_22 = arith.constant 0 : index
      %c0_23 = arith.constant 0 : index
      %c0_24 = arith.constant 0 : index
      %27 = vector.load %arg7[%c0_22, %c0_23, %c0_24] : memref<1x8x128xf32, #tpu.memory_space<vmem>>, vector<1x8x128xf32>
      tpu.vector_store %arg7[%c0_22, %c0_23, %c0_24], %26 {strides = array<i32>} : memref<1x8x128xf32, #tpu.memory_space<vmem>>, vector<1x8x128xf32>,
    } else {
    }
    return
  }
  func.func @transform_0(%arg0: i32, %arg1: i32) -> (i32, i32) {
    %c0_i32 = arith.constant 0 : i32
    return %arg0, %arg1 : i32, i32
  }
  func.func @transform_1(%arg0: i32, %arg1: i32) -> (i32, i32) {
    %c0_i32 = arith.constant 0 : i32
    %c0_i32_0 = arith.constant 0 : i32
    return %arg1, %c0_i32 : i32, i32
  }
  func.func @transform_2(%arg0: i32, %arg1: i32) -> (i32, i32) {
    %c0_i32 = arith.constant 0 : i32
    %c0_i32_0 = arith.constant 0 : i32
    %c0_i32_1 = arith.constant 0 : i32
    return %c0_i32, %c0_i32_0 : i32, i32
  }
  func.func @transform_3(%arg0: i32, %arg1: i32) -> (i32, i32) {
    %c0_i32 = arith.constant 0 : i32
    %c0_i32_0 = arith.constant 0 : i32
    return %arg0, %c0_i32 : i32, i32
  }
  func.func @transform_4(%arg0: i32, %arg1: i32) -> (i32, i32, i32) {
    %c0_i32 = arith.constant 0 : i32
    %c0_i32_0 = arith.constant 0 : i32
    %c0_i32_1 = arith.constant 0 : i32
    return %arg0, %c0_i32, %c0_i32_0 : i32, i32, i32
  }
  func.func @transform_5(%arg0: i32, %arg1: i32) -> (i32, i32, i32) {
    %c0_i32 = arith.constant 0 : i32
    %c0_i32_0 = arith.constant 0 : i32
    %c0_i32_1 = arith.constant 0 : i32
    return %arg0, %c0_i32, %c0_i32_0 : i32, i32, i32
  }
}

</mosaic_0001>

<llo_original>
// kernel: tpu_custom_call.1
$region0: #{tpu_custom_call.1}
  #allocation0 [shape = 'u32[]', space=smem, size = 0x4, offset = 0x4, fixed_abs, tag = 'smem constant byte address 0x4 - core index']
  #allocation1 [shape = 'u32[144,128]{1,0:T(1,128)}', space=vmem, size = 0x12000, scoped, tag = 'internal scratch']
  #allocation2 [shape = 'f32[256,128]{1,0:T(8,128)}', space=vmem, size = 0x20000, scoped, tag = 'scratch operand']
  %s0 = inlined_call_operand.hbm [shape: bf16[512,128], index: 0, kind: input, shape index: {}]
  %s1 = inlined_call_operand.hbm [shape: bf16[128,128], index: 1, kind: input, shape index: {}]
  %s2 = inlined_call_operand.vmem [shape: f32[1,128], index: 2, kind: input, shape index: {}]
  %s3 = inlined_call_operand.hbm [shape: bf16[512,128], index: 3, kind: output, shape index: {0}]
  %s4 = inlined_call_operand.hbm [shape: f32[2,8,128], index: 4, kind: output, shape index: {1}]
  %s5 = inlined_call_operand.hbm [shape: f32[2,8,128], index: 5, kind: output, shape index: {2}]
  %6 = xla_tuple %s3, %s4, %s5
  %s7 = sld [smem:[#allocation0]]
  $region77: #{tpu_custom_call.1} parent=0
    _
  %s9 = ssub.s32 1, %s7
  %s10 = scalar_select 0, %s9, %s7
  $region1: #{tpu_custom_call.1} parent=0
    #allocation3 [shape = 'u8[131072]{0}', space=vmem, size = 0x20000, scoped, tag = 'input window, operand 0']
    #allocation4 [shape = 's32[2]{0}', space=sflag, size = 0x8, scoped, tag = 'scoped memory for tpu_custom_call.1']
    #allocation5 [shape = 's32[2]{0}', space=sflag, size = 0x8, scoped, tag = 'scoped memory for tpu_custom_call.1']
    #allocation6 [shape = 'u8[32768]{0}', space=vmem, size = 0x8000, scoped, tag = 'input window, operand 1, single buffered']
    #allocation7 [shape = 's32[1]{0}', space=sflag, size = 0x4, scoped, tag = 'scoped memory for tpu_custom_call.1']
    #allocation8 [shape = 'u8[131072]{0}', space=vmem, size = 0x20000, scoped, tag = 'output window, operand 0']
    #allocation9 [shape = 'u8[8192]{0}', space=vmem, size = 0x2000, scoped, tag = 'output window, operand 1']
    #allocation10 [shape = 's32[2]{0}', space=sflag, size = 0x8, scoped, tag = 'scoped memory for tpu_custom_call.1']
    #allocation11 [shape = 'u8[8192]{0}', space=vmem, size = 0x2000, scoped, tag = 'output window, operand 2']
    %11 = vsyncpa [#allocation4], 0
    %s12 = scalar_lea.sflag [#allocation4], 1
    %13 = vsyncpa %s12, 0
    %14 = vsyncpa [#allocation7], 0
    %15 = vsyncpa [#allocation5], 0
    %s16 = scalar_lea.sflag [#allocation5], 1
    %17 = vsyncpa %s16, 0
    %18 = vsyncpa [#allocation10], 0
    %s19 = scalar_lea.sflag [#allocation10], 1
    %20 = vsyncpa %s19, 0
    loop: start=0, step=1, limit=4
    $region2: #{tpu_custom_call.1} parent=1 // loop_pre_header
      _
    $region3: #{tpu_custom_call.1} parent=1 // loop_header
      %s22 = sphi 0, %s26
      %p23 = scmp.ge.s32.totalorder %s22, 4
      %s29 = sphi 0, %s41
      %s30 = sphi 0, %s37
      %s31 = sphi 0, %s29
      %s32 = sphi 0, %s30
      %s33 = sphi 0, %s31
      %s34 = sphi 0, %s32
      %s46 = sphi 0, %s48
      %s49 = sphi 0, %s46
      %s50 = sphi 0, %s49
      %s66 = sphi 0, %s50
      %s72 = sphi 0, %s74
      %s75 = sphi 0, %s72
      %s76 = sphi 0, %s75
      %s92 = sphi 0, %s76
      %s96 = sphi 0, %s96
      %s98 = sphi 0, %s96
      %s99 = sphi 0, %s98
      %s113 = sphi 0, %s99
      %s119 = sphi 0, %s121
      %s122 = sphi 0, %s119
      %s123 = sphi 0, %s122
      %s139 = sphi 0, %s123
      %s145 = sphi 0, %s147
      %s148 = sphi 0, %s145
      %s149 = sphi 0, %s148
      %s165 = sphi 0, %s149
      %s171 = sphi 0, %s173
      %s174 = sphi 0, %s171
      %s175 = sphi 0, %s174
      %s191 = sphi 0, %s175
    $region4: #{tpu_custom_call.1} parent=1 // loop_header_branch
      %25 = sbr.rel (%p23) target = $region8
    $region5: #{tpu_custom_call.1} parent=1 // loop_body
      %s27 = ssub.s32 %s22, 1
      %s28 = ssub.s32 %s22, 2
      %s35 = sadd.s32 1, %s30
      %p36 = scmp.ge.s32.totalorder %s35, 1
      %s37 = scalar_select %p36, 0, %s35
      %s38 = sadd.s32 1, %s29
      %s39 = scalar_select %p36, %s38, %s29
      %p40 = scmp.ge.s32.totalorder %s39, 2
      %s41 = scalar_select %p40, 0, %s39
      %s42 = ssub.s32 %s29, %s41
      %s43 = ssub.s32 %s30, %s37
      %s44 = sor.u32 %s42, %s43
      %p45 = scmp.eq.s32.totalorder %s44, 0
      %s47 = sadd.s32 %s46, 1
      %s48 = scalar_select %p45, %s46, %s47
      %p51 = pneg %p45
      %p52 = scmp.eq.s32.totalorder %s22, 1
      %p53 = por %p51, %p52
      %p54 = scmp.ne.s32.totalorder %s46, %s49
      %p55 = scmp.eq.s32.totalorder %s22, 0
      %p56 = por %p54, %p55
      %p57 = scmp.ne.s32.totalorder %s46, %s49
      %p58 = scmp.eq.s32.totalorder %s27, 1
      %p59 = por %p57, %p58
      %p60 = scmp.ne.s32.totalorder %s49, %s50
      %p61 = scmp.eq.s32.totalorder %s27, 0
      %p62 = por %p60, %p61
      %p63 = scmp.ne.s32.totalorder %s49, %s50
      %p64 = scmp.eq.s32.totalorder %s28, 1
      %p65 = por %p63, %p64
      %p67 = scmp.ne.s32.totalorder %s50, %s66
      %p68 = scmp.eq.s32.totalorder %s28, 0
      %p69 = por %p67, %p68
      %s70 = ssub.s32 %s30, %s37
      %p71 = scmp.eq.s32.totalorder %s70, 0
      %s73 = sadd.s32 %s72, 1
      %s74 = scalar_select %p71, %s72, %s73
      %p77 = pneg %p71
      %p78 = scmp.eq.s32.totalorder %s22, 1
      %p79 = por %p77, %p78
      %p80 = scmp.ne.s32.totalorder %s72, %s75
      %p81 = scmp.eq.s32.totalorder %s22, 0
      %p82 = por %p80, %p81
      %p83 = scmp.ne.s32.totalorder %s72, %s75
      %p84 = scmp.eq.s32.totalorder %s27, 1
      %p85 = por %p83, %p84
      %p86 = scmp.ne.s32.totalorder %s75, %s76
      %p87 = scmp.eq.s32.totalorder %s27, 0
      %p88 = por %p86, %p87
      %p89 = scmp.ne.s32.totalorder %s75, %s76
      %p90 = scmp.eq.s32.totalorder %s28, 1
      %p91 = por %p89, %p90
      %p93 = scmp.ne.s32.totalorder %s76, %s92
      %p94 = scmp.eq.s32.totalorder %s28, 0
      %p95 = por %p93, %p94
      %s97 = sadd.s32 %s96, 1
      %p100 = scmp.eq.s32.totalorder %s22, 1
      %p101 = scmp.ne.s32.totalorder %s96, %s98
      %p102 = scmp.eq.s32.totalorder %s22, 0
      %p103 = por %p101, %p102
      %p104 = scmp.ne.s32.totalorder %s96, %s98
      %p105 = scmp.eq.s32.totalorder %s27, 1
      %p106 = por %p104, %p105
      %p107 = scmp.ne.s32.totalorder %s98, %s99
      %p108 = scmp.eq.s32.totalorder %s27, 0
      %p109 = por %p107, %p108
      %p110 = scmp.ne.s32.totalorder %s98, %s99
      %p111 = scmp.eq.s32.totalorder %s28, 1
      %p112 = por %p110, %p111
      %p114 = scmp.ne.s32.totalorder %s99, %s113
      %p115 = scmp.eq.s32.totalorder %s28, 0
      %p116 = por %p114, %p115
      %s117 = ssub.s32 %s29, %s41
      %p118 = scmp.eq.s32.totalorder %s117, 0
      %s120 = sadd.s32 %s119, 1
      %s121 = scalar_select %p118, %s119, %s120
      %p124 = pneg %p118
      %p125 = scmp.eq.s32.totalorder %s22, 1
      %p126 = por %p124, %p125
      %p127 = scmp.ne.s32.totalorder %s119, %s122
      %p128 = scmp.eq.s32.totalorder %s22, 0
      %p129 = por %p127, %p128
      %p130 = scmp.ne.s32.totalorder %s119, %s122
      %p131 = scmp.eq.s32.totalorder %s27, 1
      %p132 = por %p130, %p131
      %p133 = scmp.ne.s32.totalorder %s122, %s123
      %p134 = scmp.eq.s32.totalorder %s27, 0
      %p135 = por %p133, %p134
      %p136 = scmp.ne.s32.totalorder %s122, %s123
      %p137 = scmp.eq.s32.totalorder %s28, 1
      %p138 = por %p136, %p137
      %p140 = scmp.ne.s32.totalorder %s123, %s139
      %p141 = scmp.eq.s32.totalorder %s28, 0
      %p142 = por %p140, %p141
      %s143 = ssub.s32 %s29, %s41
      %p144 = scmp.eq.s32.totalorder %s143, 0
      %s146 = sadd.s32 %s145, 1
      %s147 = scalar_select %p144, %s145, %s146
      %p150 = pneg %p144
      %p151 = scmp.eq.s32.totalorder %s22, 1
      %p152 = por %p150, %p151
      %p153 = scmp.ne.s32.totalorder %s145, %s148
      %p154 = scmp.eq.s32.totalorder %s22, 0
      %p155 = por %p153, %p154
      %p156 = scmp.ne.s32.totalorder %s145, %s148
      %p157 = scmp.eq.s32.totalorder %s27, 1
      %p158 = por %p156, %p157
      %p159 = scmp.ne.s32.totalorder %s148, %s149
      %p160 = scmp.eq.s32.totalorder %s27, 0
      %p161 = por %p159, %p160
      %p162 = scmp.ne.s32.totalorder %s148, %s149
      %p163 = scmp.eq.s32.totalorder %s28, 1
      %p164 = por %p162, %p163
      %p166 = scmp.ne.s32.totalorder %s149, %s165
      %p167 = scmp.eq.s32.totalorder %s28, 0
      %p168 = por %p166, %p167
      %s169 = ssub.s32 %s29, %s41
      %p170 = scmp.eq.s32.totalorder %s169, 0
      %s172 = sadd.s32 %s171, 1
      %s173 = scalar_select %p170, %s171, %s172
      %p176 = pneg %p170
      %p177 = scmp.eq.s32.totalorder %s22, 1
      %p178 = por %p176, %p177
      %p179 = scmp.ne.s32.totalorder %s171, %s174
      %p180 = scmp.eq.s32.totalorder %s22, 0
      %p181 = por %p179, %p180
      %p182 = scmp.ne.s32.totalorder %s171, %s174
      %p183 = scmp.eq.s32.totalorder %s27, 1
      %p184 = por %p182, %p183
      %p185 = scmp.ne.s32.totalorder %s174, %s175
      %p186 = scmp.eq.s32.totalorder %s27, 0
      %p187 = por %p185, %p186
      %p188 = scmp.ne.s32.totalorder %s174, %s175
      %p189 = scmp.eq.s32.totalorder %s28, 1
      %p190 = por %p188, %p189
      %p192 = scmp.ne.s32.totalorder %s175, %s191
      %p193 = scmp.eq.s32.totalorder %s28, 0
      %p194 = por %p192, %p193
      %p195 = scmp.le.s32.totalorder 1, %s22
      %p196 = scmp.lt.s32.totalorder %s22, 3
      %p197 = pnand %p195, %p196
      %p198 = pneg %p197
      // Predicated region
      $region9: #{tpu_custom_call.1} parent=5 // pred_check
        _
      $region10: #{tpu_custom_call.1} parent=5 // pred_check_branch
        %200 = sbr.rel (%p197) target = $region12
      $region11: #{tpu_custom_call.1} parent=5 // pred_region
        %s201 = ssub.s32 %s22, 1
        // Predicated region
        $region13: #{tpu_custom_call.1} parent=11 // pred_check
          %p202 = pneg %p88
        $region14: #{tpu_custom_call.1} parent=11 // pred_check_branch
          %204 = sbr.rel (%p202) target = $region16
        $region15: #{tpu_custom_call.1} parent=11 // pred_region
          %s205 = smul.u32 16, %s32
          %s207 = ssub.s32 1024, 1024
          %208 = vsyncadd [#allocation7], %s207
          %s209 = smul.addr %s205, 64
          %s210 = scalar_lea.hbm %s1, %s209
          %s211 = sshll.u32 [#allocation6], 4
          %s212 = int_to_ptr.vmem [resolvable:$true] %s211
          %217 = dma.hbm_to_vmem [thread:$0]  %s210, 1024, %s212, [#allocation7], 64, 64, 4
        $region16: #{tpu_custom_call.1} parent=11 // pred_fallthru
          _
        // Predicated region
        $region17: #{tpu_custom_call.1} parent=11 // pred_check
          %p218 = pneg %p109
        $region18: #{tpu_custom_call.1} parent=11 // pred_check_branch
          %220 = sbr.rel (%p218) target = $region20
        $region19: #{tpu_custom_call.1} parent=11 // pred_region
          _
        $region20: #{tpu_custom_call.1} parent=11 // pred_fallthru
          _
      $region12: #{tpu_custom_call.1} parent=5 // pred_fallthru
        _
      %p221 = scmp.lt.s32.totalorder %s22, 2
      // Predicated region
      $region21: #{tpu_custom_call.1} parent=5 // pred_check
        %p222 = pneg %p221
      $region22: #{tpu_custom_call.1} parent=5 // pred_check_branch
        %224 = sbr.rel (%p222) target = $region24
      $region23: #{tpu_custom_call.1} parent=5 // pred_region
        // Predicated region
        $region25: #{tpu_custom_call.1} parent=23 // pred_check
          %p225 = pneg %p56
        $region26: #{tpu_custom_call.1} parent=23 // pred_check_branch
          %227 = sbr.rel (%p225) target = $region28
        $region27: #{tpu_custom_call.1} parent=23 // pred_region
          %s228 = sand.u32 %s46, 1
          %s229 = scalar_lea.sflag [#allocation4], %s228
          %s230 = sand.u32 %s46, 1
          %s231 = smul.addr %s230, 128
          %s232 = scalar_lea.vmem [#allocation3], %s231
          %s233 = smul.u32 32, %s29
          %s235 = ssub.s32 2048, 2048
          %236 = vsyncadd %s229, %s235
          %s237 = sadd.s32 %s30, %s233
          %s238 = smul.addr %s237, 64
          %s239 = scalar_lea.hbm %s0, %s238
          %s240 = sshll.u32 %s232, 4
          %s241 = int_to_ptr.vmem [resolvable:$true] %s240
          %246 = dma.hbm_to_vmem [thread:$0]  %s239, 2048, %s241, %s229, 64, 64, 4
        $region28: #{tpu_custom_call.1} parent=23 // pred_fallthru
          _
      $region24: #{tpu_custom_call.1} parent=5 // pred_fallthru
        _
      %p247 = scmp.le.s32.totalorder 1, %s22
      %p248 = scmp.lt.s32.totalorder %s22, 3
      %p249 = pnand %p247, %p248
      %p250 = pneg %p249
      // Predicated region
      $region29: #{tpu_custom_call.1} parent=5 // pred_check
        _
      $region30: #{tpu_custom_call.1} parent=5 // pred_check_branch
        %252 = sbr.rel (%p249) target = $region32
      $region31: #{tpu_custom_call.1} parent=5 // pred_region
        %s253 = ssub.s32 %s22, 1
        %s254 = sand.u32 %s49, 1
        %s255 = scalar_lea.sflag [#allocation4], %s254
        %s256 = sand.u32 %s49, 1
        %s257 = smul.addr %s256, 128
        %s258 = scalar_lea.vmem [#allocation3], %s257
        // Predicated region
        $region33: #{tpu_custom_call.1} parent=31 // pred_check
          %p259 = pneg %p62
        $region34: #{tpu_custom_call.1} parent=31 // pred_check_branch
          %261 = sbr.rel (%p259) target = $region36
        $region35: #{tpu_custom_call.1} parent=31 // pred_region
          %262 = dma.done %s255, 2048
        $region36: #{tpu_custom_call.1} parent=31 // pred_fallthru
          _
        // Predicated region
        $region37: #{tpu_custom_call.1} parent=31 // pred_check
          %p263 = pneg %p88
        $region38: #{tpu_custom_call.1} parent=31 // pred_check_branch
          %265 = sbr.rel (%p263) target = $region40
        $region39: #{tpu_custom_call.1} parent=31 // pred_region
          %266 = dma.done [#allocation7], 1024
        $region40: #{tpu_custom_call.1} parent=31 // pred_fallthru
          _
        %s267 = sand.u32 %s49, 1
        %s268 = scalar_lea.sflag [#allocation4], %s267
        %s269 = sand.u32 %s49, 1
        %s270 = smul.addr %s269, 128
        %s271 = scalar_lea.vmem [#allocation3], %s270
        %p272 = pneg %p62
        %p273 = pneg %p59
        %p274 = pneg %p88
        %p275 = pneg %p85
        %p276 = pneg %p109
        %p277 = pneg %p106
        %p278 = pneg %p135
        %p279 = pneg %p132
        %s280 = sand.u32 %s122, 1
        %s281 = scalar_lea.sflag [#allocation5], %s280
        %s282 = sand.u32 %s122, 1
        %s283 = smul.addr %s282, 128
        %s284 = scalar_lea.vmem [#allocation8], %s283
        %p285 = pneg %p161
        %p286 = pneg %p158
        %s287 = sand.u32 %s27, 1
        %s288 = scalar_lea.sflag [#allocation10], %s287
        %s289 = sand.u32 %s148, 1
        %s290 = smul.addr %s289, 8
        %s291 = scalar_lea.vmem [#allocation9], %s290
        %p292 = pneg %p187
        %p293 = pneg %p184
        %s294 = sand.u32 %s27, 1
        %s295 = scalar_lea.sflag [#allocation10], %s294
        %s296 = sand.u32 %s174, 1
        %s297 = smul.addr %s296, 8
        %s298 = scalar_lea.vmem [#allocation11], %s297
        %s299 = smul.u32 32, %s31
        %s300 = smul.u32 16, %s32
        %s301 = smul.u32 32, %s31
        %p303 = scmp.eq.s32.totalorder %s32, 0
        // Predicated region
        $region41: #{tpu_custom_call.1} parent=31 // pred_check
          %p304 = pneg %p303
        $region42: #{tpu_custom_call.1} parent=31 // pred_check_branch
          %306 = sbr.rel (%p304) target = $region44
        $region43: #{tpu_custom_call.1} parent=31 // pred_region
          %307 = vst [vmem:[#allocation2] sm:$0xff] 0.0
          %308 = vst [vmem:[#allocation2 + $0x8] sm:$0xff] 0.0
          %309 = vst [vmem:[#allocation2 + $0x10] sm:$0xff] 0.0
          %310 = vst [vmem:[#allocation2 + $0x18] sm:$0xff] 0.0
          %311 = vst [vmem:[#allocation2 + $0x20] sm:$0xff] 0.0
          %312 = vst [vmem:[#allocation2 + $0x28] sm:$0xff] 0.0
          %313 = vst [vmem:[#allocation2 + $0x30] sm:$0xff] 0.0
          %314 = vst [vmem:[#allocation2 + $0x38] sm:$0xff] 0.0
          %315 = vst [vmem:[#allocation2 + $0x40] sm:$0xff] 0.0
          %316 = vst [vmem:[#allocation2 + $0x48] sm:$0xff] 0.0
          %317 = vst [vmem:[#allocation2 + $0x50] sm:$0xff] 0.0
          %318 = vst [vmem:[#allocation2 + $0x58] sm:$0xff] 0.0
          %319 = vst [vmem:[#allocation2 + $0x60] sm:$0xff] 0.0
          %320 = vst [vmem:[#allocation2 + $0x68] sm:$0xff] 0.0
          %321 = vst [vmem:[#allocation2 + $0x70] sm:$0xff] 0.0
          %322 = vst [vmem:[#allocation2 + $0x78] sm:$0xff] 0.0
          %323 = vst [vmem:[#allocation2 + $0x80] sm:$0xff] 0.0
          %324 = vst [vmem:[#allocation2 + $0x88] sm:$0xff] 0.0
          %325 = vst [vmem:[#allocation2 + $0x90] sm:$0xff] 0.0
          %326 = vst [vmem:[#allocation2 + $0x98] sm:$0xff] 0.0
          %327 = vst [vmem:[#allocation2 + $0xa0] sm:$0xff] 0.0
          %328 = vst [vmem:[#allocation2 + $0xa8] sm:$0xff] 0.0
          %329 = vst [vmem:[#allocation2 + $0xb0] sm:$0xff] 0.0
          %330 = vst [vmem:[#allocation2 + $0xb8] sm:$0xff] 0.0
          %331 = vst [vmem:[#allocation2 + $0xc0] sm:$0xff] 0.0
          %332 = vst [vmem:[#allocation2 + $0xc8] sm:$0xff] 0.0
          %333 = vst [vmem:[#allocation2 + $0xd0] sm:$0xff] 0.0
          %334 = vst [vmem:[#allocation2 + $0xd8] sm:$0xff] 0.0
          %335 = vst [vmem:[#allocation2 + $0xe0] sm:$0xff] 0.0
          %336 = vst [vmem:[#allocation2 + $0xe8] sm:$0xff] 0.0
          %337 = vst [vmem:[#allocation2 + $0xf0] sm:$0xff] 0.0
          %338 = vst [vmem:[#allocation2 + $0xf8] sm:$0xff] 0.0
        $region44: #{tpu_custom_call.1} parent=31 // pred_fallthru
          _
        %v339 = vld [vmem:[#allocation2] sm:$0xff]
        %v340 = vld [vmem:[#allocation2 + $0x8] sm:$0xff]
        %v341 = vld [vmem:[#allocation2 + $0x10] sm:$0xff]
        %v342 = vld [vmem:[#allocation2 + $0x18] sm:$0xff]
        %v343 = vld [vmem:[#allocation2 + $0x20] sm:$0xff]
        %v344 = vld [vmem:[#allocation2 + $0x28] sm:$0xff]
        %v345 = vld [vmem:[#allocation2 + $0x30] sm:$0xff]
        %v346 = vld [vmem:[#allocation2 + $0x38] sm:$0xff]
        %v347 = vld [vmem:[#allocation2 + $0x40] sm:$0xff]
        %v348 = vld [vmem:[#allocation2 + $0x48] sm:$0xff]
        %v349 = vld [vmem:[#allocation2 + $0x50] sm:$0xff]
        %v350 = vld [vmem:[#allocation2 + $0x58] sm:$0xff]
        %v351 = vld [vmem:[#allocation2 + $0x60] sm:$0xff]
        %v352 = vld [vmem:[#allocation2 + $0x68] sm:$0xff]
        %v353 = vld [vmem:[#allocation2 + $0x70] sm:$0xff]
        %v354 = vld [vmem:[#allocation2 + $0x78] sm:$0xff]
        %v355 = vld [vmem:[#allocation2 + $0x80] sm:$0xff]
        %v356 = vld [vmem:[#allocation2 + $0x88] sm:$0xff]
        %v357 = vld [vmem:[#allocation2 + $0x90] sm:$0xff]
        %v358 = vld [vmem:[#allocation2 + $0x98] sm:$0xff]
        %v359 = vld [vmem:[#allocation2 + $0xa0] sm:$0xff]
        %v360 = vld [vmem:[#allocation2 + $0xa8] sm:$0xff]
        %v361 = vld [vmem:[#allocation2 + $0xb0] sm:$0xff]
        %v362 = vld [vmem:[#allocation2 + $0xb8] sm:$0xff]
        %v363 = vld [vmem:[#allocation2 + $0xc0] sm:$0xff]
        %v364 = vld [vmem:[#allocation2 + $0xc8] sm:$0xff]
        %v365 = vld [vmem:[#allocation2 + $0xd0] sm:$0xff]
        %v366 = vld [vmem:[#allocation2 + $0xd8] sm:$0xff]
        %v367 = vld [vmem:[#allocation2 + $0xe0] sm:$0xff]
        %v368 = vld [vmem:[#allocation2 + $0xe8] sm:$0xff]
        %v369 = vld [vmem:[#allocation2 + $0xf0] sm:$0xff]
        %v370 = vld [vmem:[#allocation2 + $0xf8] sm:$0xff]
        %v371 = vld [vmem:[%s258] sm:$0xf]
        %v372 = vld [vmem:[%s258 + $0x4] sm:$0xf]
        %v373 = vld [vmem:[%s258 + $0x8] sm:$0xf]
        %v374 = vld [vmem:[%s258 + $0xc] sm:$0xf]
        %v375 = vld [vmem:[%s258 + $0x10] sm:$0xf]
        %v376 = vld [vmem:[%s258 + $0x14] sm:$0xf]
        %v377 = vld [vmem:[%s258 + $0x18] sm:$0xf]
        %v378 = vld [vmem:[%s258 + $0x1c] sm:$0xf]
        %v379 = vld [vmem:[%s258 + $0x20] sm:$0xf]
        %v380 = vld [vmem:[%s258 + $0x24] sm:$0xf]
        %v381 = vld [vmem:[%s258 + $0x28] sm:$0xf]
        %v382 = vld [vmem:[%s258 + $0x2c] sm:$0xf]
        %v383 = vld [vmem:[%s258 + $0x30] sm:$0xf]
        %v384 = vld [vmem:[%s258 + $0x34] sm:$0xf]
        %v385 = vld [vmem:[%s258 + $0x38] sm:$0xf]
        %v386 = vld [vmem:[%s258 + $0x3c] sm:$0xf]
        %v387 = vld [vmem:[%s258 + $0x40] sm:$0xf]
        %v388 = vld [vmem:[%s258 + $0x44] sm:$0xf]
        %v389 = vld [vmem:[%s258 + $0x48] sm:$0xf]
        %v390 = vld [vmem:[%s258 + $0x4c] sm:$0xf]
        %v391 = vld [vmem:[%s258 + $0x50] sm:$0xf]
        %v392 = vld [vmem:[%s258 + $0x54] sm:$0xf]
        %v393 = vld [vmem:[%s258 + $0x58] sm:$0xf]
        %v394 = vld [vmem:[%s258 + $0x5c] sm:$0xf]
        %v395 = vld [vmem:[%s258 + $0x60] sm:$0xf]
        %v396 = vld [vmem:[%s258 + $0x64] sm:$0xf]
        %v397 = vld [vmem:[%s258 + $0x68] sm:$0xf]
        %v398 = vld [vmem:[%s258 + $0x6c] sm:$0xf]
        %v399 = vld [vmem:[%s258 + $0x70] sm:$0xf]
        %v400 = vld [vmem:[%s258 + $0x74] sm:$0xf]
        %v401 = vld [vmem:[%s258 + $0x78] sm:$0xf]
        %v402 = vld [vmem:[%s258 + $0x7c] sm:$0xf]
        %v403 = vld [vmem:[#allocation6] sm:$0xf]
        %v404 = vld [vmem:[#allocation6 + $0x4] sm:$0xf]
        %v405 = vld [vmem:[#allocation6 + $0x8] sm:$0xf]
        %v406 = vld [vmem:[#allocation6 + $0xc] sm:$0xf]
        %v407 = vld [vmem:[#allocation6 + $0x10] sm:$0xf]
        %v408 = vld [vmem:[#allocation6 + $0x14] sm:$0xf]
        %v409 = vld [vmem:[#allocation6 + $0x18] sm:$0xf]
        %v410 = vld [vmem:[#allocation6 + $0x1c] sm:$0xf]
        %v411 = vld [vmem:[#allocation6 + $0x20] sm:$0xf]
        %v412 = vld [vmem:[#allocation6 + $0x24] sm:$0xf]
        %v413 = vld [vmem:[#allocation6 + $0x28] sm:$0xf]
        %v414 = vld [vmem:[#allocation6 + $0x2c] sm:$0xf]
        %v415 = vld [vmem:[#allocation6 + $0x30] sm:$0xf]
        %v416 = vld [vmem:[#allocation6 + $0x34] sm:$0xf]
        %v417 = vld [vmem:[#allocation6 + $0x38] sm:$0xf]
        %v418 = vld [vmem:[#allocation6 + $0x3c] sm:$0xf]
        %v451 = vunpack.c.l.b16 %v371
        %v452 = vunpack.c.l.b16 %v372
        %v453 = vunpack.c.l.b16 %v373
        %v454 = vunpack.c.l.b16 %v374
        %v455 = vunpack.c.l.b16 %v375
        %v456 = vunpack.c.l.b16 %v376
        %v457 = vunpack.c.l.b16 %v377
        %v458 = vunpack.c.l.b16 %v378
        %v459 = vunpack.c.l.b16 %v379
        %v460 = vunpack.c.l.b16 %v380
        %v461 = vunpack.c.l.b16 %v381
        %v462 = vunpack.c.l.b16 %v382
        %v463 = vunpack.c.l.b16 %v383
        %v464 = vunpack.c.l.b16 %v384
        %v465 = vunpack.c.l.b16 %v385
        %v466 = vunpack.c.l.b16 %v386
        %v467 = vunpack.c.l.b16 %v387
        %v468 = vunpack.c.l.b16 %v388
        %v469 = vunpack.c.l.b16 %v389
        %v470 = vunpack.c.l.b16 %v390
        %v471 = vunpack.c.l.b16 %v391
        %v472 = vunpack.c.l.b16 %v392
        %v473 = vunpack.c.l.b16 %v393
        %v474 = vunpack.c.l.b16 %v394
        %v475 = vunpack.c.l.b16 %v395
        %v476 = vunpack.c.l.b16 %v396
        %v477 = vunpack.c.l.b16 %v397
        %v478 = vunpack.c.l.b16 %v398
        %v479 = vunpack.c.l.b16 %v399
        %v480 = vunpack.c.l.b16 %v400
        %v481 = vunpack.c.l.b16 %v401
        %v482 = vunpack.c.l.b16 %v402
        %v483 = vpack.c.b16 %v452, %v451
        %v484 = vpack.c.b16 %v454, %v453
        %v485 = vpack.c.b16 %v456, %v455
        %v486 = vpack.c.b16 %v458, %v457
        %v487 = vpack.c.b16 %v460, %v459
        %v488 = vpack.c.b16 %v462, %v461
        %v489 = vpack.c.b16 %v464, %v463
        %v490 = vpack.c.b16 %v466, %v465
        %v491 = vpack.c.b16 %v468, %v467
        %v492 = vpack.c.b16 %v470, %v469
        %v493 = vpack.c.b16 %v472, %v471
        %v494 = vpack.c.b16 %v474, %v473
        %v495 = vpack.c.b16 %v476, %v475
        %v496 = vpack.c.b16 %v478, %v477
        %v497 = vpack.c.b16 %v480, %v479
        %v498 = vpack.c.b16 %v482, %v481
        %v531 = vunpack.c.l.b16 %v403
        %v532 = vunpack.c.l.b16 %v404
        %v533 = vunpack.c.l.b16 %v405
        %v534 = vunpack.c.l.b16 %v406
        %v535 = vunpack.c.l.b16 %v407
        %v536 = vunpack.c.l.b16 %v408
        %v537 = vunpack.c.l.b16 %v409
        %v538 = vunpack.c.l.b16 %v410
        %v539 = vunpack.c.l.b16 %v411
        %v540 = vunpack.c.l.b16 %v412
        %v541 = vunpack.c.l.b16 %v413
        %v542 = vunpack.c.l.b16 %v414
        %v543 = vunpack.c.l.b16 %v415
        %v544 = vunpack.c.l.b16 %v416
        %v545 = vunpack.c.l.b16 %v417
        %v546 = vunpack.c.l.b16 %v418
        %v547 = vpack.c.b16 %v532, %v531
        %v548 = vpack.c.b16 %v534, %v533
        %v549 = vpack.c.b16 %v536, %v535
        %v550 = vpack.c.b16 %v538, %v537
        %v551 = vpack.c.b16 %v540, %v539
        %v552 = vpack.c.b16 %v542, %v541
        %v553 = vpack.c.b16 %v544, %v543
        %v554 = vpack.c.b16 %v546, %v545
        %563 = vmatprep.subr.bf16.mxu0 0
        %564 = vmatpush1.bf16.msra.mxu0 %v547
        %565 = vmatprep.subr.bf16.mxu0 0
        %566 = vmatpush1.bf16.msra.mxu0 %v548
        %567 = vmatprep.subr.bf16.mxu0 0
        %568 = vmatpush1.bf16.msra.mxu0 %v549
        %569 = vmatprep.subr.bf16.mxu0 0
        %570 = vmatpush1.bf16.msra.mxu0 %v550
        %571 = vmatprep.subr.bf16.mxu0 0
        %572 = vmatpush1.bf16.msra.mxu0 %v551
        %573 = vmatprep.subr.bf16.mxu0 0
        %574 = vmatpush1.bf16.msra.mxu0 %v552
        %575 = vmatprep.subr.bf16.mxu0 0
        %576 = vmatpush1.bf16.msra.mxu0 %v553
        %577 = vmatprep.subr.bf16.mxu0 0
        %578 = vmatpush1.bf16.msra.mxu0 %v554
        %579 = vmatprep.subr.bf16.mxu0 0
        %580 = vmatpush1.bf16.msra.mxu0 0
        %581 = vmatprep.subr.bf16.mxu0 0
        %582 = vmatpush1.bf16.msra.mxu0 0
        %583 = vmatprep.subr.bf16.mxu0 0
        %584 = vmatpush1.bf16.msra.mxu0 0
        %585 = vmatprep.subr.bf16.mxu0 0
        %586 = vmatpush1.bf16.msra.mxu0 0
        %587 = vmatprep.subr.bf16.mxu0 0
        %588 = vmatpush1.bf16.msra.mxu0 0
        %589 = vmatprep.subr.bf16.mxu0 0
        %590 = vmatpush1.bf16.msra.mxu0 0
        %591 = vmatprep.subr.bf16.mxu0 0
        %592 = vmatpush1.bf16.msra.mxu0 0
        %593 = vmatprep.subr.bf16.mxu0 0
        %594 = vmatpush1.bf16.msra.mxu0 0
        %595 = vmatprep.mubr.bf16.mxu0 0
        %596 = vmatmul.mubr.bf16.gmra.mrb[0].mxu0 %v483
        %v597 = vpop.f32.mrb[0].mxu0
        %v598 = vadd.f32 0.0, %v597
        %v599 = vpop.f32.mrb[0].mxu0
        %v600 = vpop.f32.mrb[0].mxu0
        %v601 = vadd.f32 0.0, %v600
        %v602 = vpop.f32.mrb[0].mxu0
        %603 = vmatprep.mubr.bf16.mxu0 0
        %604 = vmatmul.mubr.bf16.gmra.mrb[0].mxu0 %v484
        %v605 = vpop.f32.mrb[0].mxu0
        %v606 = vadd.f32 0.0, %v605
        %v607 = vpop.f32.mrb[0].mxu0
        %v608 = vpop.f32.mrb[0].mxu0
        %v609 = vadd.f32 0.0, %v608
        %v610 = vpop.f32.mrb[0].mxu0
        %611 = vmatprep.mubr.bf16.mxu0 0
        %612 = vmatmul.mubr.bf16.gmra.mrb[0].mxu0 %v485
        %v613 = vpop.f32.mrb[0].mxu0
        %v614 = vadd.f32 0.0, %v613
        %v615 = vpop.f32.mrb[0].mxu0
        %v616 = vpop.f32.mrb[0].mxu0
        %v617 = vadd.f32 0.0, %v616
        %v618 = vpop.f32.mrb[0].mxu0
        %619 = vmatprep.mubr.bf16.mxu0 0
        %620 = vmatmul.mubr.bf16.gmra.mrb[0].mxu0 %v486
        %v621 = vpop.f32.mrb[0].mxu0
        %v622 = vadd.f32 0.0, %v621
        %v623 = vpop.f32.mrb[0].mxu0
        %v624 = vpop.f32.mrb[0].mxu0
        %v625 = vadd.f32 0.0, %v624
        %v626 = vpop.f32.mrb[0].mxu0
        %627 = vmatprep.mubr.bf16.mxu0 0
        %628 = vmatmul.mubr.bf16.gmra.mrb[0].mxu0 %v487
        %v629 = vpop.f32.mrb[0].mxu0
        %v630 = vadd.f32 0.0, %v629
        %v631 = vpop.f32.mrb[0].mxu0
        %v632 = vpop.f32.mrb[0].mxu0
        %v633 = vadd.f32 0.0, %v632
        %v634 = vpop.f32.mrb[0].mxu0
        %635 = vmatprep.mubr.bf16.mxu0 0
        %636 = vmatmul.mubr.bf16.gmra.mrb[0].mxu0 %v488
        %v637 = vpop.f32.mrb[0].mxu0
        %v638 = vadd.f32 0.0, %v637
        %v639 = vpop.f32.mrb[0].mxu0
        %v640 = vpop.f32.mrb[0].mxu0
        %v641 = vadd.f32 0.0, %v640
        %v642 = vpop.f32.mrb[0].mxu0
        %643 = vmatprep.mubr.bf16.mxu0 0
        %644 = vmatmul.mubr.bf16.gmra.mrb[0].mxu0 %v489
        %v645 = vpop.f32.mrb[0].mxu0
        %v646 = vadd.f32 0.0, %v645
        %v647 = vpop.f32.mrb[0].mxu0
        %v648 = vpop.f32.mrb[0].mxu0
        %v649 = vadd.f32 0.0, %v648
        %v650 = vpop.f32.mrb[0].mxu0
        %651 = vmatprep.mubr.bf16.mxu0 0
        %652 = vmatmul.mubr.bf16.gmra.mrb[0].mxu0 %v490
        %v653 = vpop.f32.mrb[0].mxu0
        %v654 = vadd.f32 0.0, %v653
        %v655 = vpop.f32.mrb[0].mxu0
        %v656 = vpop.f32.mrb[0].mxu0
        %v657 = vadd.f32 0.0, %v656
        %v658 = vpop.f32.mrb[0].mxu0
        %659 = vmatprep.mubr.bf16.mxu0 0
        %660 = vmatmul.mubr.bf16.gmra.mrb[0].mxu0 %v491
        %v661 = vpop.f32.mrb[0].mxu0
        %v662 = vadd.f32 0.0, %v661
        %v663 = vpop.f32.mrb[0].mxu0
        %v664 = vpop.f32.mrb[0].mxu0
        %v665 = vadd.f32 0.0, %v664
        %v666 = vpop.f32.mrb[0].mxu0
        %667 = vmatprep.mubr.bf16.mxu0 0
        %668 = vmatmul.mubr.bf16.gmra.mrb[0].mxu0 %v492
        %v669 = vpop.f32.mrb[0].mxu0
        %v670 = vadd.f32 0.0, %v669
        %v671 = vpop.f32.mrb[0].mxu0
        %v672 = vpop.f32.mrb[0].mxu0
        %v673 = vadd.f32 0.0, %v672
        %v674 = vpop.f32.mrb[0].mxu0
        %675 = vmatprep.mubr.bf16.mxu0 0
        %676 = vmatmul.mubr.bf16.gmra.mrb[0].mxu0 %v493
        %v677 = vpop.f32.mrb[0].mxu0
        %v678 = vadd.f32 0.0, %v677
        %v679 = vpop.f32.mrb[0].mxu0
        %v680 = vpop.f32.mrb[0].mxu0
        %v681 = vadd.f32 0.0, %v680
        %v682 = vpop.f32.mrb[0].mxu0
        %683 = vmatprep.mubr.bf16.mxu0 0
        %684 = vmatmul.mubr.bf16.gmra.mrb[0].mxu0 %v494
        %v685 = vpop.f32.mrb[0].mxu0
        %v686 = vadd.f32 0.0, %v685
        %v687 = vpop.f32.mrb[0].mxu0
        %v688 = vpop.f32.mrb[0].mxu0
        %v689 = vadd.f32 0.0, %v688
        %v690 = vpop.f32.mrb[0].mxu0
        %691 = vmatprep.mubr.bf16.mxu0 0
        %692 = vmatmul.mubr.bf16.gmra.mrb[0].mxu0 %v495
        %v693 = vpop.f32.mrb[0].mxu0
        %v694 = vadd.f32 0.0, %v693
        %v695 = vpop.f32.mrb[0].mxu0
        %v696 = vpop.f32.mrb[0].mxu0
        %v697 = vadd.f32 0.0, %v696
        %v698 = vpop.f32.mrb[0].mxu0
        %699 = vmatprep.mubr.bf16.mxu0 0
        %700 = vmatmul.mubr.bf16.gmra.mrb[0].mxu0 %v496
        %v701 = vpop.f32.mrb[0].mxu0
        %v702 = vadd.f32 0.0, %v701
        %v703 = vpop.f32.mrb[0].mxu0
        %v704 = vpop.f32.mrb[0].mxu0
        %v705 = vadd.f32 0.0, %v704
        %v706 = vpop.f32.mrb[0].mxu0
        %707 = vmatprep.mubr.bf16.mxu0 0
        %708 = vmatmul.mubr.bf16.gmra.mrb[0].mxu0 %v497
        %v709 = vpop.f32.mrb[0].mxu0
        %v710 = vadd.f32 0.0, %v709
        %v711 = vpop.f32.mrb[0].mxu0
        %v712 = vpop.f32.mrb[0].mxu0
        %v713 = vadd.f32 0.0, %v712
        %v714 = vpop.f32.mrb[0].mxu0
        %715 = vmatprep.mubr.bf16.mxu0 0
        %716 = vmatmul.mubr.bf16.gmra.mrb[0].mxu0 %v498
        %v717 = vpop.f32.mrb[0].mxu0
        %v718 = vadd.f32 0.0, %v717
        %v719 = vpop.f32.mrb[0].mxu0
        %v720 = vpop.f32.mrb[0].mxu0
        %v721 = vadd.f32 0.0, %v720
        %v722 = vpop.f32.mrb[0].mxu0
        %723 = vdwg.mxu0
        %v724 = vadd.f32 %v339, %v598
        %v725 = vadd.f32 %v340, %v601
        %v726 = vadd.f32 %v341, %v606
        %v727 = vadd.f32 %v342, %v609
        %v728 = vadd.f32 %v343, %v614
        %v729 = vadd.f32 %v344, %v617
        %v730 = vadd.f32 %v345, %v622
        %v731 = vadd.f32 %v346, %v625
        %v732 = vadd.f32 %v347, %v630
        %v733 = vadd.f32 %v348, %v633
        %v734 = vadd.f32 %v349, %v638
        %v735 = vadd.f32 %v350, %v641
        %v736 = vadd.f32 %v351, %v646
        %v737 = vadd.f32 %v352, %v649
        %v738 = vadd.f32 %v353, %v654
        %v739 = vadd.f32 %v354, %v657
        %v740 = vadd.f32 %v355, %v662
        %v741 = vadd.f32 %v356, %v665
        %v742 = vadd.f32 %v357, %v670
        %v743 = vadd.f32 %v358, %v673
        %v744 = vadd.f32 %v359, %v678
        %v745 = vadd.f32 %v360, %v681
        %v746 = vadd.f32 %v361, %v686
        %v747 = vadd.f32 %v362, %v689
        %v748 = vadd.f32 %v363, %v694
        %v749 = vadd.f32 %v364, %v697
        %v750 = vadd.f32 %v365, %v702
        %v751 = vadd.f32 %v366, %v705
        %v752 = vadd.f32 %v367, %v710
        %v753 = vadd.f32 %v368, %v713
        %v754 = vadd.f32 %v369, %v718
        %v755 = vadd.f32 %v370, %v721
        %756 = vst [vmem:[#allocation2] sm:$0xff] %v724
        %757 = vst [vmem:[#allocation2 + $0x8] sm:$0xff] %v725
        %758 = vst [vmem:[#allocation2 + $0x10] sm:$0xff] %v726
        %759 = vst [vmem:[#allocation2 + $0x18] sm:$0xff] %v727
        %760 = vst [vmem:[#allocation2 + $0x20] sm:$0xff] %v728
        %761 = vst [vmem:[#allocation2 + $0x28] sm:$0xff] %v729
        %762 = vst [vmem:[#allocation2 + $0x30] sm:$0xff] %v730
        %763 = vst [vmem:[#allocation2 + $0x38] sm:$0xff] %v731
        %764 = vst [vmem:[#allocation2 + $0x40] sm:$0xff] %v732
        %765 = vst [vmem:[#allocation2 + $0x48] sm:$0xff] %v733
        %766 = vst [vmem:[#allocation2 + $0x50] sm:$0xff] %v734
        %767 = vst [vmem:[#allocation2 + $0x58] sm:$0xff] %v735
        %768 = vst [vmem:[#allocation2 + $0x60] sm:$0xff] %v736
        %769 = vst [vmem:[#allocation2 + $0x68] sm:$0xff] %v737
        %770 = vst [vmem:[#allocation2 + $0x70] sm:$0xff] %v738
        %771 = vst [vmem:[#allocation2 + $0x78] sm:$0xff] %v739
        %772 = vst [vmem:[#allocation2 + $0x80] sm:$0xff] %v740
        %773 = vst [vmem:[#allocation2 + $0x88] sm:$0xff] %v741
        %774 = vst [vmem:[#allocation2 + $0x90] sm:$0xff] %v742
        %775 = vst [vmem:[#allocation2 + $0x98] sm:$0xff] %v743
        %776 = vst [vmem:[#allocation2 + $0xa0] sm:$0xff] %v744
        %777 = vst [vmem:[#allocation2 + $0xa8] sm:$0xff] %v745
        %778 = vst [vmem:[#allocation2 + $0xb0] sm:$0xff] %v746
        %779 = vst [vmem:[#allocation2 + $0xb8] sm:$0xff] %v747
        %780 = vst [vmem:[#allocation2 + $0xc0] sm:$0xff] %v748
        %781 = vst [vmem:[#allocation2 + $0xc8] sm:$0xff] %v749
        %782 = vst [vmem:[#allocation2 + $0xd0] sm:$0xff] %v750
        %783 = vst [vmem:[#allocation2 + $0xd8] sm:$0xff] %v751
        %784 = vst [vmem:[#allocation2 + $0xe0] sm:$0xff] %v752
        %785 = vst [vmem:[#allocation2 + $0xe8] sm:$0xff] %v753
        %786 = vst [vmem:[#allocation2 + $0xf0] sm:$0xff] %v754
        %787 = vst [vmem:[#allocation2 + $0xf8] sm:$0xff] %v755
        // Predicated region
        $region45: #{tpu_custom_call.1} parent=31 // pred_check
          %p788 = pneg %p303
        $region46: #{tpu_custom_call.1} parent=31 // pred_check_branch
          %790 = sbr.rel (%p788) target = $region48
        $region47: #{tpu_custom_call.1} parent=31 // pred_region
          %v791 = vld [vmem:[#allocation2] sm:$0xff]
          %v792 = vld [vmem:[#allocation2 + $0x8] sm:$0xff]
          %v793 = vld [vmem:[#allocation2 + $0x10] sm:$0xff]
          %v794 = vld [vmem:[#allocation2 + $0x18] sm:$0xff]
          %v795 = vld [vmem:[#allocation2 + $0x20] sm:$0xff]
          %v796 = vld [vmem:[#allocation2 + $0x28] sm:$0xff]
          %v797 = vld [vmem:[#allocation2 + $0x30] sm:$0xff]
          %v798 = vld [vmem:[#allocation2 + $0x38] sm:$0xff]
          %v799 = vld [vmem:[#allocation2 + $0x40] sm:$0xff]
          %v800 = vld [vmem:[#allocation2 + $0x48] sm:$0xff]
          %v801 = vld [vmem:[#allocation2 + $0x50] sm:$0xff]
          %v802 = vld [vmem:[#allocation2 + $0x58] sm:$0xff]
          %v803 = vld [vmem:[#allocation2 + $0x60] sm:$0xff]
          %v804 = vld [vmem:[#allocation2 + $0x68] sm:$0xff]
          %v805 = vld [vmem:[#allocation2 + $0x70] sm:$0xff]
          %v806 = vld [vmem:[#allocation2 + $0x78] sm:$0xff]
          %v807 = vld [vmem:[#allocation2 + $0x80] sm:$0xff]
          %v808 = vld [vmem:[#allocation2 + $0x88] sm:$0xff]
          %v809 = vld [vmem:[#allocation2 + $0x90] sm:$0xff]
          %v810 = vld [vmem:[#allocation2 + $0x98] sm:$0xff]
          %v811 = vld [vmem:[#allocation2 + $0xa0] sm:$0xff]
          %v812 = vld [vmem:[#allocation2 + $0xa8] sm:$0xff]
          %v813 = vld [vmem:[#allocation2 + $0xb0] sm:$0xff]
          %v814 = vld [vmem:[#allocation2 + $0xb8] sm:$0xff]
          %v815 = vld [vmem:[#allocation2 + $0xc0] sm:$0xff]
          %v816 = vld [vmem:[#allocation2 + $0xc8] sm:$0xff]
          %v817 = vld [vmem:[#allocation2 + $0xd0] sm:$0xff]
          %v818 = vld [vmem:[#allocation2 + $0xd8] sm:$0xff]
          %v819 = vld [vmem:[#allocation2 + $0xe0] sm:$0xff]
          %v820 = vld [vmem:[#allocation2 + $0xe8] sm:$0xff]
          %v821 = vld [vmem:[#allocation2 + $0xf0] sm:$0xff]
          %v822 = vld [vmem:[#allocation2 + $0xf8] sm:$0xff]
          %v823 = vld [vmem:[%s2] sm:$0x1]
          %v825 = vlaneseq
          %v826 = vshrl.u32 %v825, 7
          %v827 = vsub.s32 0, %v826
          %v828 = vrot.slane %v823, %v827
          %v830 = vadd.f32 %v791, %v828
          %v831 = vadd.f32 %v792, %v828
          %v832 = vadd.f32 %v793, %v828
          %v833 = vadd.f32 %v794, %v828
          %v834 = vadd.f32 %v795, %v828
          %v835 = vadd.f32 %v796, %v828
          %v836 = vadd.f32 %v797, %v828
          %v837 = vadd.f32 %v798, %v828
          %v838 = vadd.f32 %v799, %v828
          %v839 = vadd.f32 %v800, %v828
          %v840 = vadd.f32 %v801, %v828
          %v841 = vadd.f32 %v802, %v828
          %v842 = vadd.f32 %v803, %v828
          %v843 = vadd.f32 %v804, %v828
          %v844 = vadd.f32 %v805, %v828
          %v845 = vadd.f32 %v806, %v828
          %v846 = vadd.f32 %v807, %v828
          %v847 = vadd.f32 %v808, %v828
          %v848 = vadd.f32 %v809, %v828
          %v849 = vadd.f32 %v810, %v828
          %v850 = vadd.f32 %v811, %v828
          %v851 = vadd.f32 %v812, %v828
          %v852 = vadd.f32 %v813, %v828
          %v853 = vadd.f32 %v814, %v828
          %v854 = vadd.f32 %v815, %v828
          %v855 = vadd.f32 %v816, %v828
          %v856 = vadd.f32 %v817, %v828
          %v857 = vadd.f32 %v818, %v828
          %v858 = vadd.f32 %v819, %v828
          %v859 = vadd.f32 %v820, %v828
          %v860 = vadd.f32 %v821, %v828
          %v861 = vadd.f32 %v822, %v828
          %v862 = vmax.f32 %v830, 0.0
          %v863 = vmax.f32 %v831, 0.0
          %v864 = vmax.f32 %v832, 0.0
          %v865 = vmax.f32 %v833, 0.0
          %v866 = vmax.f32 %v834, 0.0
          %v867 = vmax.f32 %v835, 0.0
          %v868 = vmax.f32 %v836, 0.0
          %v869 = vmax.f32 %v837, 0.0
          %v870 = vmax.f32 %v838, 0.0
          %v871 = vmax.f32 %v839, 0.0
          %v872 = vmax.f32 %v840, 0.0
          %v873 = vmax.f32 %v841, 0.0
          %v874 = vmax.f32 %v842, 0.0
          %v875 = vmax.f32 %v843, 0.0
          %v876 = vmax.f32 %v844, 0.0
          %v877 = vmax.f32 %v845, 0.0
          %v878 = vmax.f32 %v846, 0.0
          %v879 = vmax.f32 %v847, 0.0
          %v880 = vmax.f32 %v848, 0.0
          %v881 = vmax.f32 %v849, 0.0
          %v882 = vmax.f32 %v850, 0.0
          %v883 = vmax.f32 %v851, 0.0
          %v884 = vmax.f32 %v852, 0.0
          %v885 = vmax.f32 %v853, 0.0
          %v886 = vmax.f32 %v854, 0.0
          %v887 = vmax.f32 %v855, 0.0
          %v888 = vmax.f32 %v856, 0.0
          %v889 = vmax.f32 %v857, 0.0
          %v890 = vmax.f32 %v858, 0.0
          %v891 = vmax.f32 %v859, 0.0
          %v892 = vmax.f32 %v860, 0.0
          %v893 = vmax.f32 %v861, 0.0
          %v894 = vpack.c.bf16 %v863, %v862
          %v895 = vpack.c.bf16 %v865, %v864
          %v896 = vpack.c.bf16 %v867, %v866
          %v897 = vpack.c.bf16 %v869, %v868
          %v898 = vpack.c.bf16 %v871, %v870
          %v899 = vpack.c.bf16 %v873, %v872
          %v900 = vpack.c.bf16 %v875, %v874
          %v901 = vpack.c.bf16 %v877, %v876
          %v902 = vpack.c.bf16 %v879, %v878
          %v903 = vpack.c.bf16 %v881, %v880
          %v904 = vpack.c.bf16 %v883, %v882
          %v905 = vpack.c.bf16 %v885, %v884
          %v906 = vpack.c.bf16 %v887, %v886
          %v907 = vpack.c.bf16 %v889, %v888
          %v908 = vpack.c.bf16 %v891, %v890
          %v909 = vpack.c.bf16 %v893, %v892
          %v926 = vunpack.c.l.b16 %v894
          %v927 = vunpack.c.h.b16 %v894
          %v928 = vunpack.c.l.b16 %v895
          %v929 = vunpack.c.h.b16 %v895
          %v930 = vunpack.c.l.b16 %v896
          %v931 = vunpack.c.h.b16 %v896
          %v932 = vunpack.c.l.b16 %v897
          %v933 = vunpack.c.h.b16 %v897
          %v934 = vunpack.c.l.b16 %v898
          %v935 = vunpack.c.h.b16 %v898
          %v936 = vunpack.c.l.b16 %v899
          %v937 = vunpack.c.h.b16 %v899
          %v938 = vunpack.c.l.b16 %v900
          %v939 = vunpack.c.h.b16 %v900
          %v940 = vunpack.c.l.b16 %v901
          %v941 = vunpack.c.h.b16 %v901
          %v942 = vunpack.c.l.b16 %v902
          %v943 = vunpack.c.h.b16 %v902
          %v944 = vunpack.c.l.b16 %v903
          %v945 = vunpack.c.h.b16 %v903
          %v946 = vunpack.c.l.b16 %v904
          %v947 = vunpack.c.h.b16 %v904
          %v948 = vunpack.c.l.b16 %v905
          %v949 = vunpack.c.h.b16 %v905
          %v950 = vunpack.c.l.b16 %v906
          %v951 = vunpack.c.h.b16 %v906
          %v952 = vunpack.c.l.b16 %v907
          %v953 = vunpack.c.h.b16 %v907
          %v954 = vunpack.c.l.b16 %v908
          %v955 = vunpack.c.h.b16 %v908
          %v956 = vunpack.c.l.b16 %v909
          %v957 = vunpack.c.h.b16 %v909
          %v958 = vpack.c.b16 %v926, %v926
          %v959 = vpack.c.b16 %v927, %v927
          %v960 = vpack.c.b16 %v928, %v928
          %v961 = vpack.c.b16 %v929, %v929
          %v962 = vpack.c.b16 %v930, %v930
          %v963 = vpack.c.b16 %v931, %v931
          %v964 = vpack.c.b16 %v932, %v932
          %v965 = vpack.c.b16 %v933, %v933
          %v966 = vpack.c.b16 %v934, %v934
          %v967 = vpack.c.b16 %v935, %v935
          %v968 = vpack.c.b16 %v936, %v936
          %v969 = vpack.c.b16 %v937, %v937
          %v970 = vpack.c.b16 %v938, %v938
          %v971 = vpack.c.b16 %v939, %v939
          %v972 = vpack.c.b16 %v940, %v940
          %v973 = vpack.c.b16 %v941, %v941
          %v974 = vpack.c.b16 %v942, %v942
          %v975 = vpack.c.b16 %v943, %v943
          %v976 = vpack.c.b16 %v944, %v944
          %v977 = vpack.c.b16 %v945, %v945
          %v978 = vpack.c.b16 %v946, %v946
          %v979 = vpack.c.b16 %v947, %v947
          %v980 = vpack.c.b16 %v948, %v948
          %v981 = vpack.c.b16 %v949, %v949
          %v982 = vpack.c.b16 %v950, %v950
          %v983 = vpack.c.b16 %v951, %v951
          %v984 = vpack.c.b16 %v952, %v952
          %v985 = vpack.c.b16 %v953, %v953
          %v986 = vpack.c.b16 %v954, %v954
          %v987 = vpack.c.b16 %v955, %v955
          %v988 = vpack.c.b16 %v956, %v956
          %v989 = vpack.c.b16 %v957, %v957
          %1022 = vst [vmem:[%s284] sm:$0xf] %v958
          %1023 = vst [vmem:[%s284 + $0x4] sm:$0xf] %v959
          %1024 = vst [vmem:[%s284 + $0x8] sm:$0xf] %v960
          %1025 = vst [vmem:[%s284 + $0xc] sm:$0xf] %v961
          %1026 = vst [vmem:[%s284 + $0x10] sm:$0xf] %v962
          %1027 = vst [vmem:[%s284 + $0x14] sm:$0xf] %v963
          %1028 = vst [vmem:[%s284 + $0x18] sm:$0xf] %v964
          %1029 = vst [vmem:[%s284 + $0x1c] sm:$0xf] %v965
          %1030 = vst [vmem:[%s284 + $0x20] sm:$0xf] %v966
          %1031 = vst [vmem:[%s284 + $0x24] sm:$0xf] %v967
          %1032 = vst [vmem:[%s284 + $0x28] sm:$0xf] %v968
          %1033 = vst [vmem:[%s284 + $0x2c] sm:$0xf] %v969
          %1034 = vst [vmem:[%s284 + $0x30] sm:$0xf] %v970
          %1035 = vst [vmem:[%s284 + $0x34] sm:$0xf] %v971
          %1036 = vst [vmem:[%s284 + $0x38] sm:$0xf] %v972
          %1037 = vst [vmem:[%s284 + $0x3c] sm:$0xf] %v973
          %1038 = vst [vmem:[%s284 + $0x40] sm:$0xf] %v974
          %1039 = vst [vmem:[%s284 + $0x44] sm:$0xf] %v975
          %1040 = vst [vmem:[%s284 + $0x48] sm:$0xf] %v976
          %1041 = vst [vmem:[%s284 + $0x4c] sm:$0xf] %v977
          %1042 = vst [vmem:[%s284 + $0x50] sm:$0xf] %v978
          %1043 = vst [vmem:[%s284 + $0x54] sm:$0xf] %v979
          %1044 = vst [vmem:[%s284 + $0x58] sm:$0xf] %v980
          %1045 = vst [vmem:[%s284 + $0x5c] sm:$0xf] %v981
          %1046 = vst [vmem:[%s284 + $0x60] sm:$0xf] %v982
          %1047 = vst [vmem:[%s284 + $0x64] sm:$0xf] %v983
          %1048 = vst [vmem:[%s284 + $0x68] sm:$0xf] %v984
          %1049 = vst [vmem:[%s284 + $0x6c] sm:$0xf] %v985
          %1050 = vst [vmem:[%s284 + $0x70] sm:$0xf] %v986
          %1051 = vst [vmem:[%s284 + $0x74] sm:$0xf] %v987
          %1052 = vst [vmem:[%s284 + $0x78] sm:$0xf] %v988
          %1053 = vst [vmem:[%s284 + $0x7c] sm:$0xf] %v989
          %v1054 = vadd.f32 %v862, %v863
          %v1055 = vadd.f32 %v1054, %v864
          %v1056 = vadd.f32 %v1055, %v865
          %v1057 = vadd.f32 %v1056, %v866
          %v1058 = vadd.f32 %v1057, %v867
          %v1059 = vadd.f32 %v1058, %v868
          %v1060 = vadd.f32 %v1059, %v869
          %v1061 = vadd.f32 %v1060, %v870
          %v1062 = vadd.f32 %v1061, %v871
          %v1063 = vadd.f32 %v1062, %v872
          %v1064 = vadd.f32 %v1063, %v873
          %v1065 = vadd.f32 %v1064, %v874
          %v1066 = vadd.f32 %v1065, %v875
          %v1067 = vadd.f32 %v1066, %v876
          %v1068 = vadd.f32 %v1067, %v877
          %v1069 = vadd.f32 %v1068, %v878
          %v1070 = vadd.f32 %v1069, %v879
          %v1071 = vadd.f32 %v1070, %v880
          %v1072 = vadd.f32 %v1071, %v881
          %v1073 = vadd.f32 %v1072, %v882
          %v1074 = vadd.f32 %v1073, %v883
          %v1075 = vadd.f32 %v1074, %v884
          %v1076 = vadd.f32 %v1075, %v885
          %v1077 = vadd.f32 %v1076, %v886
          %v1078 = vadd.f32 %v1077, %v887
          %v1079 = vadd.f32 %v1078, %v888
          %v1080 = vadd.f32 %v1079, %v889
          %v1081 = vadd.f32 %v1080, %v890
          %v1082 = vadd.f32 %v1081, %v891
          %v1083 = vadd.f32 %v1082, %v892
          %v1084 = vadd.f32 %v1083, %v893
          %1085 = vst [vmem:[%s291] sm:$0xff] %v1084
          %v1086 = vmul.f32 %v862, %v862
          %v1087 = vmul.f32 %v863, %v863
          %v1088 = vmul.f32 %v864, %v864
          %v1089 = vmul.f32 %v865, %v865
          %v1090 = vmul.f32 %v866, %v866
          %v1091 = vmul.f32 %v867, %v867
          %v1092 = vmul.f32 %v868, %v868
          %v1093 = vmul.f32 %v869, %v869
          %v1094 = vmul.f32 %v870, %v870
          %v1095 = vmul.f32 %v871, %v871
          %v1096 = vmul.f32 %v872, %v872
          %v1097 = vmul.f32 %v873, %v873
          %v1098 = vmul.f32 %v874, %v874
          %v1099 = vmul.f32 %v875, %v875
          %v1100 = vmul.f32 %v876, %v876
          %v1101 = vmul.f32 %v877, %v877
          %v1102 = vmul.f32 %v878, %v878
          %v1103 = vmul.f32 %v879, %v879
          %v1104 = vmul.f32 %v880, %v880
          %v1105 = vmul.f32 %v881, %v881
          %v1106 = vmul.f32 %v882, %v882
          %v1107 = vmul.f32 %v883, %v883
          %v1108 = vmul.f32 %v884, %v884
          %v1109 = vmul.f32 %v885, %v885
          %v1110 = vmul.f32 %v886, %v886
          %v1111 = vmul.f32 %v887, %v887
          %v1112 = vmul.f32 %v888, %v888
          %v1113 = vmul.f32 %v889, %v889
          %v1114 = vmul.f32 %v890, %v890
          %v1115 = vmul.f32 %v891, %v891
          %v1116 = vmul.f32 %v892, %v892
          %v1117 = vmul.f32 %v893, %v893
          %v1118 = vadd.f32 %v1086, %v1087
          %v1119 = vadd.f32 %v1118, %v1088
          %v1120 = vadd.f32 %v1119, %v1089
          %v1121 = vadd.f32 %v1120, %v1090
          %v1122 = vadd.f32 %v1121, %v1091
          %v1123 = vadd.f32 %v1122, %v1092
          %v1124 = vadd.f32 %v1123, %v1093
          %v1125 = vadd.f32 %v1124, %v1094
          %v1126 = vadd.f32 %v1125, %v1095
          %v1127 = vadd.f32 %v1126, %v1096
          %v1128 = vadd.f32 %v1127, %v1097
          %v1129 = vadd.f32 %v1128, %v1098
          %v1130 = vadd.f32 %v1129, %v1099
          %v1131 = vadd.f32 %v1130, %v1100
          %v1132 = vadd.f32 %v1131, %v1101
          %v1133 = vadd.f32 %v1132, %v1102
          %v1134 = vadd.f32 %v1133, %v1103
          %v1135 = vadd.f32 %v1134, %v1104
          %v1136 = vadd.f32 %v1135, %v1105
          %v1137 = vadd.f32 %v1136, %v1106
          %v1138 = vadd.f32 %v1137, %v1107
          %v1139 = vadd.f32 %v1138, %v1108
          %v1140 = vadd.f32 %v1139, %v1109
          %v1141 = vadd.f32 %v1140, %v1110
          %v1142 = vadd.f32 %v1141, %v1111
          %v1143 = vadd.f32 %v1142, %v1112
          %v1144 = vadd.f32 %v1143, %v1113
          %v1145 = vadd.f32 %v1144, %v1114
          %v1146 = vadd.f32 %v1145, %v1115
          %v1147 = vadd.f32 %v1146, %v1116
          %v1148 = vadd.f32 %v1147, %v1117
          %1149 = vst [vmem:[%s298] sm:$0xff] %v1148
        $region48: #{tpu_custom_call.1} parent=31 // pred_fallthru
          _
        %s1150 = sand.u32 %s122, 1
        %s1151 = scalar_lea.sflag [#allocation5], %s1150
        %s1152 = sand.u32 %s122, 1
        %s1153 = smul.addr %s1152, 128
        %s1154 = scalar_lea.vmem [#allocation8], %s1153
        %s1155 = sand.u32 %s27, 1
        %s1156 = scalar_lea.sflag [#allocation10], %s1155
        %s1157 = sand.u32 %s148, 1
        %s1158 = smul.addr %s1157, 8
        %s1159 = scalar_lea.vmem [#allocation9], %s1158
        %s1160 = sand.u32 %s27, 1
        %s1161 = scalar_lea.sflag [#allocation10], %s1160
        %s1162 = sand.u32 %s174, 1
        %s1163 = smul.addr %s1162, 8
        %s1164 = scalar_lea.vmem [#allocation11], %s1163
        // Predicated region
        $region49: #{tpu_custom_call.1} parent=31 // pred_check
          %p1165 = pneg %p132
        $region50: #{tpu_custom_call.1} parent=31 // pred_check_branch
          %1167 = sbr.rel (%p1165) target = $region52
        $region51: #{tpu_custom_call.1} parent=31 // pred_region
          %s1168 = smul.u32 32, %s31
          %s1170 = ssub.s32 2048, 2048
          %1171 = vsyncadd %s1151, %s1170
          %s1172 = smul.addr %s1168, 64
          %s1173 = scalar_lea.hbm %s3, %s1172
          %s1174 = sshll.u32 %s1154, 4
          %s1175 = int_to_ptr.vmem [resolvable:$true] %s1174
          %1180 = dma.vmem_to_hbm [thread:$0]  %s1175, 2048, %s1173, %s1151, 64, 64, 4
        $region52: #{tpu_custom_call.1} parent=31 // pred_fallthru
          _
        // Predicated region
        $region53: #{tpu_custom_call.1} parent=31 // pred_check
          %p1181 = pneg %p158
        $region54: #{tpu_custom_call.1} parent=31 // pred_check_branch
          %1183 = sbr.rel (%p1181) target = $region56
        $region55: #{tpu_custom_call.1} parent=31 // pred_region
          %s1185 = ssub.s32 128, 128
          %1186 = vsyncadd %s1156, %s1185
          %s1187 = smul.addr %s31, 128
          %s1188 = scalar_lea.hbm %s4, %s1187
          %s1190 = sshll.u32 %s1159, 4
          %s1191 = int_to_ptr.vmem [resolvable:$true] %s1190
          %1193 = dma.vmem_to_hbm [thread:$0]  %s1191, 128, %s1188, %s1156
        $region56: #{tpu_custom_call.1} parent=31 // pred_fallthru
          _
        // Predicated region
        $region57: #{tpu_custom_call.1} parent=31 // pred_check
          %p1194 = pneg %p184
        $region58: #{tpu_custom_call.1} parent=31 // pred_check_branch
          %1196 = sbr.rel (%p1194) target = $region60
        $region59: #{tpu_custom_call.1} parent=31 // pred_region
          %s1198 = ssub.s32 128, 128
          %1199 = vsyncadd %s1161, %s1198
          %s1200 = smul.addr %s31, 128
          %s1201 = scalar_lea.hbm %s5, %s1200
          %s1203 = sshll.u32 %s1164, 4
          %s1204 = int_to_ptr.vmem [resolvable:$true] %s1203
          %1206 = dma.vmem_to_hbm [thread:$0]  %s1204, 128, %s1201, %s1161
        $region60: #{tpu_custom_call.1} parent=31 // pred_fallthru
          _
      $region32: #{tpu_custom_call.1} parent=5 // pred_fallthru
        _
      %p1207 = scmp.le.s32.totalorder 2, %s22
      // Predicated region
      $region61: #{tpu_custom_call.1} parent=5 // pred_check
        %p1208 = pneg %p1207
      $region62: #{tpu_custom_call.1} parent=5 // pred_check_branch
        %1210 = sbr.rel (%p1208) target = $region64
      $region63: #{tpu_custom_call.1} parent=5 // pred_region
        %s1211 = ssub.s32 %s22, 2
        // Predicated region
        $region65: #{tpu_custom_call.1} parent=63 // pred_check
          %p1212 = pneg %p138
        $region66: #{tpu_custom_call.1} parent=63 // pred_check_branch
          %1214 = sbr.rel (%p1212) target = $region68
        $region67: #{tpu_custom_call.1} parent=63 // pred_region
          %s1215 = sand.u32 %s123, 1
          %s1216 = scalar_lea.sflag [#allocation5], %s1215
          %s1217 = sand.u32 %s123, 1
          %s1218 = smul.addr %s1217, 128
          %s1219 = scalar_lea.vmem [#allocation8], %s1218
          %1220 = dma.done %s1216, 2048
        $region68: #{tpu_custom_call.1} parent=63 // pred_fallthru
          _
        // Predicated region
        $region69: #{tpu_custom_call.1} parent=63 // pred_check
          %p1221 = pneg %p164
        $region70: #{tpu_custom_call.1} parent=63 // pred_check_branch
          %1223 = sbr.rel (%p1221) target = $region72
        $region71: #{tpu_custom_call.1} parent=63 // pred_region
          %s1224 = sand.u32 %s28, 1
          %s1225 = scalar_lea.sflag [#allocation10], %s1224
          %s1226 = sand.u32 %s149, 1
          %s1227 = smul.addr %s1226, 8
          %s1228 = scalar_lea.vmem [#allocation9], %s1227
          %1229 = dma.done %s1225, 128
        $region72: #{tpu_custom_call.1} parent=63 // pred_fallthru
          _
        // Predicated region
        $region73: #{tpu_custom_call.1} parent=63 // pred_check
          %p1230 = pneg %p190
        $region74: #{tpu_custom_call.1} parent=63 // pred_check_branch
          %1232 = sbr.rel (%p1230) target = $region76
        $region75: #{tpu_custom_call.1} parent=63 // pred_region
          %s1233 = sand.u32 %s28, 1
          %s1234 = scalar_lea.sflag [#allocation10], %s1233
          %s1235 = sand.u32 %s175, 1
          %s1236 = smul.addr %s1235, 8
          %s1237 = scalar_lea.vmem [#allocation11], %s1236
          %1238 = dma.done %s1234, 128
        $region76: #{tpu_custom_call.1} parent=63 // pred_fallthru
          _
      $region64: #{tpu_custom_call.1} parent=5 // pred_fallthru
        _
    $region6: #{tpu_custom_call.1} parent=1 // loop_footer
      %s26 = sadd.s32 1, %s22
    $region7: #{tpu_custom_call.1} parent=1 // loop_footer_branch
      %21 = sbr.rel target = $region3
    $region8: #{tpu_custom_call.1} parent=1 // loop_exit
      _
    %1239 = vsyncpa [#allocation4], 1
    %s1240 = scalar_lea.sflag [#allocation4], 1
    %1241 = vsyncpa %s1240, 1
    %1242 = vsyncpa [#allocation7], 1
    %1243 = vsyncpa [#allocation5], 1
    %s1244 = scalar_lea.sflag [#allocation5], 1
    %1245 = vsyncpa %s1244, 1
    %1246 = vsyncpa [#allocation10], 1
    %s1247 = scalar_lea.sflag [#allocation10], 1
    %1248 = vsyncpa %s1247, 1

</llo_original>
